<compile_context>
chip_gen: v6e
topology: v6e:2x2x1
jax: 0.10.0
libtpu: 0.0.40
codegen_flags: <defaults>
</compile_context>

<pallas_src>
import numpy as np
import jax
import jax.numpy as jnp
from jax.experimental import pallas as pl
from jax.experimental.pallas import tpu as pltpu


def _round_up(x, m):
    return ((x + m - 1) // m) * m


# ----------------------------- Pallas kernel --------------------------------

def _grid_gen_kernel(cp_ref, m_ref, out_ref):
    # One lane-dense MXU matmul for the whole batch:
    #   (R_pad, K_pad) @ (K_pad, n_pad) -> (R_pad, n_pad)
    out_ref[...] = jnp.dot(cp_ref[...], m_ref[...],
                           preferred_element_type=jnp.float32)


def _pallas_grid_generate(cp_T_pad, M_T_pad):
    R_pad, K_pad = cp_T_pad.shape
    _, n_pad = M_T_pad.shape
    # TODO(synk): for very large n (millions of grid points) tile the n axis
    # with a grid so double-buffered M_T tiles fit the 64 MiB v7x VMEM budget;
    # at realistic TPS sizes (n <= 3200) a single full block is optimal.
    return pl.pallas_call(
        _grid_gen_kernel,
        out_shape=jax.ShapeDtypeStruct((R_pad, n_pad), jnp.float32),
        grid_spec=pltpu.PrefetchScalarGridSpec(
            num_scalar_prefetch=0,
            grid=(1,),
            in_specs=[
                pl.BlockSpec((R_pad, K_pad), lambda i: (0, 0)),
                pl.BlockSpec((K_pad, n_pad), lambda i: (0, 0)),
            ],
            out_specs=pl.BlockSpec((R_pad, n_pad), lambda i: (0, 0)),
        ),
        compiler_params=pltpu.CompilerParams(
            dimension_semantics=("arbitrary",)),
    )(cp_T_pad, M_T_pad)


# ------------------------ GridGenerator (host glue) --------------------------

class GridGenerator:
    def __init__(self, in_channels, num_fiducial):
        self.eps = 1e-6
        self.F = num_fiducial
        # nn.Linear(in_channels, 6) with weight/bias zeroed in __init__.
        self.fc_weight = np.zeros((6, in_channels), dtype=np.float64)
        self.fc_bias = np.zeros((6,), dtype=np.float64)

    # ---- constant tensors, built on host in float64 (matches torch.double) ----
    def build_C(self):
        F = self.F
        ctrl_pts_x = np.linspace(-1.0, 1.0, F // 2, dtype=np.float64)
        ctrl_pts_y_top = -1.0 * np.ones((F // 2,), dtype=np.float64)
        ctrl_pts_y_bottom = np.ones((F // 2,), dtype=np.float64)
        ctrl_pts_top = np.stack([ctrl_pts_x, ctrl_pts_y_top], axis=1)
        ctrl_pts_bottom = np.stack([ctrl_pts_x, ctrl_pts_y_bottom], axis=1)
        return np.concatenate([ctrl_pts_top, ctrl_pts_bottom], axis=0)  # (F, 2)

    def build_P(self, I_r_size):
        I_r_height, I_r_width = I_r_size
        gx = (np.arange(-I_r_width, I_r_width, 2, dtype=np.float64) + 1.0) / I_r_width
        gy = (np.arange(-I_r_height, I_r_height, 2, dtype=np.float64) + 1.0) / I_r_height
        # torch.meshgrid default is 'ij' indexing
        mx, my = np.meshgrid(gx, gy, indexing="ij")          # (W, H) each
        P = np.stack([mx, my], axis=2)                       # (W, H, 2)
        P = np.transpose(P, (1, 0, 2))                       # (H, W, 2)
        return P.reshape(-1, 2)                              # (H*W, 2)

    def build_inv_delta_C(self, C):
        F = self.F
        hat_eye = np.eye(F, dtype=np.float64)
        hat_C = np.linalg.norm(C.reshape(1, F, 2) - C.reshape(F, 1, 2), axis=2) + hat_eye
        hat_C = (hat_C ** 2) * np.log(hat_C)
        delta_C = np.concatenate(
            [
                np.concatenate([np.ones((F, 1)), C, hat_C], axis=1),
                np.concatenate([np.zeros((2, 3)), C.T], axis=1),
                np.concatenate([np.zeros((1, 3)), np.ones((1, F))], axis=1),
            ],
            axis=0,
        )
        return np.linalg.inv(delta_C)                        # (F+3, F+3)

    def build_P_hat(self, C, P):
        F = self.F
        eps = self.eps
        n = P.shape[0]
        P_tile = np.tile(P[:, None, :], (1, F, 1))           # (n, F, 2)
        C_tile = C[None, :, :]                               # (1, F, 2)
        P_diff = P_tile - C_tile
        rbf_norm = np.linalg.norm(P_diff, ord=2, axis=2)     # (n, F)
        rbf = np.square(rbf_norm) * np.log(rbf_norm + eps)
        return np.concatenate([np.ones((n, 1)), P, rbf], axis=1)  # (n, F+3)

    def get_expand_tensor(self, batch_C_prime):
        # (B, F, 2) -> (B, F*2) -> Linear -> (B, 3, 2)
        B, H, C = batch_C_prime.shape
        flat = batch_C_prime.reshape(B, H * C)
        ex = flat @ jnp.asarray(self.fc_weight.T, jnp.float32) + jnp.asarray(
            self.fc_bias, jnp.float32)
        return ex.reshape(B, 3, 2)

    # ---------------------------- forward ----------------------------------
    def __call__(self, batch_C_prime, I_r_size):
        Fp3 = self.F + 3
        C = self.build_C()
        P = self.build_P(I_r_size)
        inv_delta_C = self.build_inv_delta_C(C)              # (F+3, F+3) f64
        P_hat = self.build_P_hat(C, P)                       # (n, F+3)   f64
        n = P_hat.shape[0]

        # Fold the constant matmul into host f64: M = P_hat @ inv_delta_C.
        # Then out[b] = M @ cp[b]  ==  out_T = cp_T @ M_T (lane-dense in n).
        M = P_hat @ inv_delta_C                              # (n, F+3) f64
        n_pad = _round_up(n, 128)
        K_pad = _round_up(Fp3, 128)
        M_T_pad_np = np.zeros((K_pad, n_pad), np.float32)
        M_T_pad_np[:Fp3, :n] = M.T.astype(np.float32)
        M_T_pad = jnp.asarray(M_T_pad_np)

        batch_C_prime = jnp.asarray(batch_C_prime, jnp.float32)
        B = batch_C_prime.shape[0]
        ex = self.get_expand_tensor(batch_C_prime)           # (B, 3, 2)
        cp = jnp.concatenate([batch_C_prime, ex], axis=1)    # (B, F+3, 2)

        # (B, F+3, 2) -> (B, 2, F+3) -> (2B, F+3), zero-pad to (R_pad, K_pad)
        R = 2 * B
        R_pad = _round_up(R, 8)
        cp_T = jnp.transpose(cp, (0, 2, 1)).reshape(R, Fp3)
        cp_T_pad = jnp.zeros((R_pad, K_pad), jnp.float32).at[:R, :Fp3].set(cp_T)

        out_T = _pallas_grid_generate(cp_T_pad, M_T_pad)     # (R_pad, n_pad)
        out = out_T[:R, :n].reshape(B, 2, n)
        return jnp.transpose(out, (0, 2, 1))                 # (B, n, 2)


# ------------------------------ reference -----------------------------------

def _reference(inv_delta_C, P_hat, cp_with_zeros):
    T = np.einsum("ij,bjk->bik", inv_delta_C, cp_with_zeros)
    return np.einsum("nj,bjk->bnk", P_hat, T)


if __name__ == "__main__":
    B = 2
    num_fiducial = 20            # F
    I_r_size = (8, 16)           # (H_r, W_r) -> n = 128 grid points
    in_channels = num_fiducial * 2

    key = jax.random.PRNGKey(0)
    batch_C_prime = jax.random.uniform(
        key, (B, num_fiducial, 2), dtype=jnp.float32, minval=-1.0, maxval=1.0)

    gg = GridGenerator(in_channels, num_fiducial)
    out = gg(batch_C_prime, I_r_size)
    out = jax.block_until_ready(out)

    # correctness check against a plain numpy float64 reference
    C = gg.build_C()
    P = gg.build_P(I_r_size)
    inv_dc = gg.build_inv_delta_C(C)
    P_hat = gg.build_P_hat(C, P)
    cp_np = np.asarray(batch_C_prime, np.float64)
    ex_np = (cp_np.reshape(B, -1) @ gg.fc_weight.T + gg.fc_bias).reshape(B, 3, 2)
    cpz = np.concatenate([cp_np, ex_np], axis=1)
    ref = _reference(inv_dc, P_hat, cpz)

    assert out.shape == (B, I_r_size[0] * I_r_size[1], 2), out.shape
    np.testing.assert_allclose(np.asarray(out, np.float64), ref, rtol=2e-4, atol=2e-4)
    print("KERNEL_OK")
</pallas_src>

<mosaic_0001>
module attributes {stable_mosaic.version = 11 : i64} {
  func.func @_grid_gen_kernel(%arg0: i32, %arg1: memref<8x128xf32, #tpu.memory_space<vmem>>, %arg2: memref<128x128xf32, #tpu.memory_space<vmem>>, %arg3: memref<8x128xf32, #tpu.memory_space<vmem>>) attributes {dimension_semantics = [#tpu.dimension_semantics<arbitrary>], iteration_bounds = array<i64: 1>, scalar_prefetch = 0 : i64, scratch_operands = 0 : i64, tpu.core_type = #tpu.core_type<tc>, window_params = [{pipeline_mode = #tpu.pipeline_mode<synchronous>, transform_indices = @transform_0, window_bounds = array<i64: 8, 128>}, {pipeline_mode = #tpu.pipeline_mode<synchronous>, transform_indices = @transform_1, window_bounds = array<i64: 128, 128>}, {pipeline_mode = #tpu.pipeline_mode<synchronous>, transform_indices = @transform_2, window_bounds = array<i64: 8, 128>}]} {
    %c0 = arith.constant 0 : index
    %c0_0 = arith.constant 0 : index
    %0 = vector.load %arg1[%c0, %c0_0] : memref<8x128xf32, #tpu.memory_space<vmem>>, vector<8x128xf32>
    %c0_1 = arith.constant 0 : index
    %c0_2 = arith.constant 0 : index
    %1 = vector.load %arg2[%c0_1, %c0_2] : memref<128x128xf32, #tpu.memory_space<vmem>>, vector<128x128xf32>
    %cst = arith.constant dense<0.000000e+00> : vector<8x128xf32>
    %2 = tpu.matmul %0, %1, %cst {dimension_numbers = #tpu.dot_dimension_numbers<[1], [0], [0], [1], [0, 0, 1, 1], [], []>} : vector<8x128xf32>, vector<128x128xf32>, vector<8x128xf32> -> vector<8x128xf32>
    %c0_3 = arith.constant 0 : index
    %c0_4 = arith.constant 0 : index
    %3 = vector.load %arg3[%c0_3, %c0_4] : memref<8x128xf32, #tpu.memory_space<vmem>>, vector<8x128xf32>
    tpu.vector_store %arg3[%c0_3, %c0_4], %2 {strides = array<i32>} : memref<8x128xf32, #tpu.memory_space<vmem>>, vector<8x128xf32>,
    return
  }
  func.func @transform_0(%arg0: i32) -> (i32, i32) {
    %c0_i32 = arith.constant 0 : i32
    %c0_i32_0 = arith.constant 0 : i32
    %c0_i32_1 = arith.constant 0 : i32
    return %c0_i32, %c0_i32_0 : i32, i32
  }
  func.func @transform_1(%arg0: i32) -> (i32, i32) {
    %c0_i32 = arith.constant 0 : i32
    %c0_i32_0 = arith.constant 0 : i32
    %c0_i32_1 = arith.constant 0 : i32
    return %c0_i32, %c0_i32_0 : i32, i32
  }
  func.func @transform_2(%arg0: i32) -> (i32, i32) {
    %c0_i32 = arith.constant 0 : i32
    %c0_i32_0 = arith.constant 0 : i32
    %c0_i32_1 = arith.constant 0 : i32
    return %c0_i32, %c0_i32_0 : i32, i32
  }
}

</mosaic_0001>

<llo_original>
// kernel: tpu_custom_call.1
$region0: #{tpu_custom_call.1}
  #allocation0 [shape = 'u32[]', space=smem, size = 0x4, offset = 0x4, fixed_abs, tag = 'smem constant byte address 0x4 - core index']
  #allocation1 [shape = 'u32[144,128]{1,0:T(1,128)}', space=vmem, size = 0x12000, scoped, tag = 'internal scratch']
  %s0 = inlined_call_operand.hbm [shape: f32[8,128], index: 0, kind: input, shape index: {}]
  %s1 = inlined_call_operand.hbm [shape: f32[128,128], index: 1, kind: input, shape index: {}]
  %s2 = inlined_call_operand.hbm [shape: f32[8,128], index: 2, kind: output, shape index: {}]
  %s3 = sld [smem:[#allocation0]]
  $region26: #{tpu_custom_call.1} parent=0
    _
  %s5 = ssub.s32 1, %s3
  %s6 = scalar_select 0, %s5, %s3
  $region1: #{tpu_custom_call.1} parent=0
    #allocation2 [shape = 'u8[4096]{0}', space=vmem, size = 0x1000, scoped, tag = 'input window, operand 0, single buffered']
    #allocation3 [shape = 's32[1]{0}', space=sflag, size = 0x4, scoped, tag = 'scoped memory for tpu_custom_call.1']
    #allocation4 [shape = 's32[1]{0}', space=sflag, size = 0x4, scoped, tag = 'scoped memory for tpu_custom_call.1']
    #allocation5 [shape = 'u8[65536]{0}', space=vmem, size = 0x10000, scoped, tag = 'input window, operand 1, single buffered']
    #allocation6 [shape = 's32[1]{0}', space=sflag, size = 0x4, scoped, tag = 'scoped memory for tpu_custom_call.1']
    #allocation7 [shape = 'u8[4096]{0}', space=vmem, size = 0x1000, scoped, tag = 'output window, operand 0, single buffered']
    %7 = vsyncpa [#allocation3], 0
    %8 = vsyncpa [#allocation6], 0
    %9 = vsyncpa [#allocation4], 0
    // Predicated region
    $region2: #{tpu_custom_call.1} parent=1 // pred_check
      _
    $region3: #{tpu_custom_call.1} parent=1 // pred_check_branch
      %11 = sbr.rel (0) target = $region5
    $region4: #{tpu_custom_call.1} parent=1 // pred_region
      %s13 = ssub.s32 128, 128
      %14 = vsyncadd [#allocation3], %s13
      %s16 = sshll.u32 [#allocation2], 4
      %s17 = int_to_ptr.vmem [resolvable:$true] %s16
      %19 = dma.hbm_to_vmem [thread:$0]  %s0, 128, %s17, [#allocation3]
    $region5: #{tpu_custom_call.1} parent=1 // pred_fallthru
      _
    // Predicated region
    $region6: #{tpu_custom_call.1} parent=1 // pred_check
      _
    $region7: #{tpu_custom_call.1} parent=1 // pred_check_branch
      %21 = sbr.rel (0) target = $region9
    $region8: #{tpu_custom_call.1} parent=1 // pred_region
      %s23 = ssub.s32 2048, 2048
      %24 = vsyncadd [#allocation6], %s23
      %s25 = sshll.u32 [#allocation5], 4
      %s26 = int_to_ptr.vmem [resolvable:$true] %s25
      %31 = dma.hbm_to_vmem [thread:$0]  %s1, 2048, %s26, [#allocation6], 128, 128, 8
    $region9: #{tpu_custom_call.1} parent=1 // pred_fallthru
      _
    // Predicated region
    $region10: #{tpu_custom_call.1} parent=1 // pred_check
      _
    $region11: #{tpu_custom_call.1} parent=1 // pred_check_branch
      %33 = sbr.rel (0) target = $region13
    $region12: #{tpu_custom_call.1} parent=1 // pred_region
      %34 = dma.done [#allocation3], 128
    $region13: #{tpu_custom_call.1} parent=1 // pred_fallthru
      _
    // Predicated region
    $region14: #{tpu_custom_call.1} parent=1 // pred_check
      _
    $region15: #{tpu_custom_call.1} parent=1 // pred_check_branch
      %36 = sbr.rel (0) target = $region17
    $region16: #{tpu_custom_call.1} parent=1 // pred_region
      %37 = dma.done [#allocation6], 2048
    $region17: #{tpu_custom_call.1} parent=1 // pred_fallthru
      _
    %v38 = vld [vmem:[#allocation2] sm:$0xff]
    %v39 = vld [vmem:[#allocation5] sm:$0xff]
    %v40 = vld [vmem:[#allocation5 + $0x8] sm:$0xff]
    %v41 = vld [vmem:[#allocation5 + $0x10] sm:$0xff]
    %v42 = vld [vmem:[#allocation5 + $0x18] sm:$0xff]
    %v43 = vld [vmem:[#allocation5 + $0x20] sm:$0xff]
    %v44 = vld [vmem:[#allocation5 + $0x28] sm:$0xff]
    %v45 = vld [vmem:[#allocation5 + $0x30] sm:$0xff]
    %v46 = vld [vmem:[#allocation5 + $0x38] sm:$0xff]
    %v47 = vld [vmem:[#allocation5 + $0x40] sm:$0xff]
    %v48 = vld [vmem:[#allocation5 + $0x48] sm:$0xff]
    %v49 = vld [vmem:[#allocation5 + $0x50] sm:$0xff]
    %v50 = vld [vmem:[#allocation5 + $0x58] sm:$0xff]
    %v51 = vld [vmem:[#allocation5 + $0x60] sm:$0xff]
    %v52 = vld [vmem:[#allocation5 + $0x68] sm:$0xff]
    %v53 = vld [vmem:[#allocation5 + $0x70] sm:$0xff]
    %v54 = vld [vmem:[#allocation5 + $0x78] sm:$0xff]
    %55 = vmatprep.subr.mxu0 0.0
    %56 = vmatpush1.msra.mxu0 %v54
    %57 = vmatprep.subr.mxu0 0.0
    %58 = vmatpush1.msra.mxu0 %v53
    %59 = vmatprep.subr.mxu0 0.0
    %60 = vmatpush1.msra.mxu0 %v52
    %61 = vmatprep.subr.mxu0 0.0
    %62 = vmatpush1.msra.mxu0 %v51
    %63 = vmatprep.subr.mxu0 0.0
    %64 = vmatpush1.msra.mxu0 %v50
    %65 = vmatprep.subr.mxu0 0.0
    %66 = vmatpush1.msra.mxu0 %v49
    %67 = vmatprep.subr.mxu0 0.0
    %68 = vmatpush1.msra.mxu0 %v48
    %69 = vmatprep.subr.mxu0 0.0
    %70 = vmatpush1.msra.mxu0 %v47
    %71 = vmatprep.subr.mxu0 0.0
    %72 = vmatpush1.msra.mxu0 %v46
    %73 = vmatprep.subr.mxu0 0.0
    %74 = vmatpush1.msra.mxu0 %v45
    %75 = vmatprep.subr.mxu0 0.0
    %76 = vmatpush1.msra.mxu0 %v44
    %77 = vmatprep.subr.mxu0 0.0
    %78 = vmatpush1.msra.mxu0 %v43
    %79 = vmatprep.subr.mxu0 0.0
    %80 = vmatpush1.msra.mxu0 %v42
    %81 = vmatprep.subr.mxu0 0.0
    %82 = vmatpush1.msra.mxu0 %v41
    %83 = vmatprep.subr.mxu0 0.0
    %84 = vmatpush1.msra.mxu0 %v40
    %85 = vmatprep.subr.mxu0 0.0
    %86 = vmatpush1.msra.mxu0 %v39
    %87 = vmatprep.subr.mxu0 0.0
    %88 = vmatpush2.msra.mxu0 0.0
    %89 = vmatprep.subr.mxu0 0.0
    %90 = vmatpush2.msra.mxu0 0.0
    %91 = vmatprep.subr.mxu0 0.0
    %92 = vmatpush2.msra.mxu0 0.0
    %93 = vmatprep.subr.mxu0 0.0
    %94 = vmatpush2.msra.mxu0 0.0
    %95 = vmatprep.subr.mxu0 0.0
    %96 = vmatpush2.msra.mxu0 0.0
    %97 = vmatprep.subr.mxu0 0.0
    %98 = vmatpush2.msra.mxu0 0.0
    %99 = vmatprep.subr.mxu0 0.0
    %100 = vmatpush2.msra.mxu0 0.0
    %101 = vmatprep.subr.mxu0 0.0
    %102 = vmatpush2.msra.mxu0 0.0
    %103 = vmatprep.subr.mxu0 0.0
    %104 = vmatpush2.msra.mxu0 0.0
    %105 = vmatprep.subr.mxu0 0.0
    %106 = vmatpush2.msra.mxu0 0.0
    %107 = vmatprep.subr.mxu0 0.0
    %108 = vmatpush2.msra.mxu0 0.0
    %109 = vmatprep.subr.mxu0 0.0
    %110 = vmatpush2.msra.mxu0 0.0
    %111 = vmatprep.subr.mxu0 0.0
    %112 = vmatpush2.msra.mxu0 0.0
    %113 = vmatprep.subr.mxu0 0.0
    %114 = vmatpush2.msra.mxu0 0.0
    %115 = vmatprep.subr.mxu0 0.0
    %116 = vmatpush2.msra.mxu0 0.0
    %117 = vmatprep.subr.mxu0 0.0
    %118 = vmatpush2.msra.mxu0 0.0
    %119 = vmatprep.mubr.f32.mxu0 0.0
    %120 = vmatmul.mubr.f32.gmra.mxu0 %v38
    %v121 = vpop.f32.mrf.mxu0
    %v122 = vadd.f32 0.0, %v121
    %v123 = vpop.f32.mrf.mxu0
    %124 = vdwg.mxu0
    %125 = vst [vmem:[#allocation7] sm:$0xff] %v122
    // Predicated region
    $region18: #{tpu_custom_call.1} parent=1 // pred_check
      _
    $region19: #{tpu_custom_call.1} parent=1 // pred_check_branch
      %127 = sbr.rel (0) target = $region21
    $region20: #{tpu_custom_call.1} parent=1 // pred_region
      %s129 = ssub.s32 128, 128
      %130 = vsyncadd [#allocation4], %s129
      %s132 = sshll.u32 [#allocation7], 4
      %s133 = int_to_ptr.vmem [resolvable:$true] %s132
      %135 = dma.vmem_to_hbm [thread:$0]  %s133, 128, %s2, [#allocation4]
    $region21: #{tpu_custom_call.1} parent=1 // pred_fallthru
      _
    // Predicated region
    $region22: #{tpu_custom_call.1} parent=1 // pred_check
      _
    $region23: #{tpu_custom_call.1} parent=1 // pred_check_branch
      %137 = sbr.rel (0) target = $region25
    $region24: #{tpu_custom_call.1} parent=1 // pred_region
      %138 = dma.done [#allocation4], 128
    $region25: #{tpu_custom_call.1} parent=1 // pred_fallthru
      _
    %139 = vsyncpa [#allocation3], 1
    %140 = vsyncpa [#allocation6], 1
    %141 = vsyncpa [#allocation4], 1

</llo_original>
